<compile_context>
chip_gen: v6e
topology: v6e:2x2x1
jax: 0.10.0
libtpu: 0.0.40
codegen_flags: <defaults>
</compile_context>

<pallas_src>
import functools
import math

import jax
import jax.numpy as jnp
from jax.experimental import pallas as pl
from jax.experimental.pallas import tpu as pltpu


_SQRT_HALF = 0.7071067811865476


def _gelu_exact(x):
    """Exact (erf-based) GELU, matching torch.nn.GELU() (approximate='none').

    erf is evaluated with the Abramowitz & Stegun 7.1.26 polynomial
    (max abs error ~1.5e-7) using only ops with guaranteed Mosaic lowerings
    (abs / exp / mul / add / div / where).
    """
    z = x * _SQRT_HALF
    az = jnp.abs(z)
    t = 1.0 / (1.0 + 0.3275911 * az)
    poly = ((((1.061405429 * t - 1.453152027) * t + 1.421413741) * t
             - 0.284496736) * t + 0.254829592) * t
    erf_abs = 1.0 - poly * jnp.exp(-az * az)
    erf_z = jnp.where(z >= 0.0, erf_abs, -erf_abs)
    return 0.5 * x * (1.0 + erf_z)


def _mlp_kernel(*refs, has_bias: bool):
    if has_bias:
        x_ref, w1_ref, b1_ref, w2_ref, b2_ref, o_ref, acc_ref = refs
    else:
        x_ref, w1_ref, w2_ref, o_ref, acc_ref = refs
        b1_ref = b2_ref = None

    j = pl.program_id(1)

    @pl.when(j == 0)
    def _init():
        acc_ref[...] = jnp.zeros_like(acc_ref)

    # First matmul on this hidden slice: (TR, E) @ (E, TH) -> (TR, TH), f32 acc.
    h = jnp.dot(x_ref[...], w1_ref[...], preferred_element_type=jnp.float32)
    if has_bias:
        h = h + b1_ref[...].astype(jnp.float32)
    h = _gelu_exact(h)

    # Second matmul, accumulated over hidden slices: (TR, TH) @ (TH, E).
    acc_ref[...] += jnp.dot(h.astype(w2_ref.dtype), w2_ref[...],
                            preferred_element_type=jnp.float32)

    @pl.when(j == pl.num_programs(1) - 1)
    def _finalize():
        y = acc_ref[...]
        if has_bias:
            y = y + b2_ref[...].astype(jnp.float32)
        o_ref[...] = y.astype(o_ref.dtype)


def _round_up(a, b):
    return (a + b - 1) // b * b


def _pick_hidden_tile(H):
    for th in (512, 384, 256, 128):
        if H % th == 0:
            return th
    return H  # small / irregular hidden: take it whole


def _pick_row_tile(rows, E, th, itemsize, sublane):
    # Conservative VMEM budget (v7x: 64 MiB physical, 32 MiB scoped default).
    budget = 40 * 1024 * 1024
    # Weight slices are double-buffered by the BlockSpec pipeline.
    weight_bytes = 2 * (E * th + th * E) * itemsize
    # Per row: x block + out block (double-buffered) + f32 acc + f32 hidden tmp.
    per_row = 2 * (E + E) * itemsize + E * 4 + th * 4
    avail = max(budget - weight_bytes, 0)
    rt = avail // max(per_row, 1)
    rt = max(sublane, min(512, rt))
    rt = (rt // sublane) * sublane
    rt = min(rt, _round_up(rows, sublane))
    return max(rt, sublane)


def mlp_forward(x, w_fc, b_fc, w_proj, b_proj, *, dropout_p: float = 0.0):
    """Fused MLP forward: dropout(gelu(x @ w_fc + b_fc) @ w_proj + b_proj).

    Weights are in (in_features, out_features) layout (i.e. torch's
    nn.Linear.weight transposed). b_fc / b_proj may be None (bias=False).
    """
    # TODO(synk): training-mode stochastic dropout (pltpu.prng_*) not
    # implemented; this matches eval-mode / dropout_p == 0.0 (identity).
    del dropout_p

    orig_shape = x.shape
    E = orig_shape[-1]
    H = w_fc.shape[-1]
    assert w_fc.shape == (E, H) and w_proj.shape == (H, E)

    rows = math.prod(orig_shape[:-1])
    x2d = x.reshape(rows, E)

    has_bias = (b_fc is not None) and (b_proj is not None)
    sublane = 16 if x2d.dtype == jnp.bfloat16 else 8
    itemsize = jnp.dtype(x2d.dtype).itemsize

    th = _pick_hidden_tile(H)
    tr = _pick_row_tile(rows, E, th, itemsize, sublane)

    rows_p = _round_up(rows, tr)
    if rows_p != rows:
        x2d = jnp.pad(x2d, ((0, rows_p - rows), (0, 0)))

    grid = (rows_p // tr, H // th)

    in_specs = [
        pl.BlockSpec((tr, E), lambda i, j: (i, 0)),     # x row tile (resident over j)
        pl.BlockSpec((E, th), lambda i, j: (0, j)),     # W_fc hidden slice
    ]
    inputs = [x2d, w_fc]
    if has_bias:
        in_specs.append(pl.BlockSpec((1, th), lambda i, j: (0, j)))
        inputs.append(b_fc.reshape(1, H))
    in_specs.append(pl.BlockSpec((th, E), lambda i, j: (j, 0)))   # W_proj hidden slice
    inputs.append(w_proj)
    if has_bias:
        in_specs.append(pl.BlockSpec((1, E), lambda i, j: (0, 0)))
        inputs.append(b_proj.reshape(1, E))

    out = pl.pallas_call(
        functools.partial(_mlp_kernel, has_bias=has_bias),
        out_shape=jax.ShapeDtypeStruct((rows_p, E), x.dtype),
        grid_spec=pltpu.PrefetchScalarGridSpec(
            num_scalar_prefetch=0,
            grid=grid,
            in_specs=in_specs,
            out_specs=pl.BlockSpec((tr, E), lambda i, j: (i, 0)),
            scratch_shapes=[pltpu.VMEM((tr, E), jnp.float32)],
        ),
        compiler_params=pltpu.CompilerParams(
            dimension_semantics=("parallel", "arbitrary"),
            vmem_limit_bytes=64 * 1024 * 1024,
        ),
    )(*inputs)

    if rows_p != rows:
        out = out[:rows]
    return out.reshape(orig_shape)


if __name__ == "__main__":
    # Module config: num_embedding=32, bias=True, dropout=0.0
    batch, seq, num_embedding = 2, 8, 32
    hidden = 4 * num_embedding

    key = jax.random.PRNGKey(0)
    kx, k1, k2, k3, k4 = jax.random.split(key, 5)

    x = jax.random.normal(kx, (batch, seq, num_embedding), dtype=jnp.float32)
    # (in, out) layout weights (== torch nn.Linear.weight transposed)
    w_fc = 0.1 * jax.random.normal(k1, (num_embedding, hidden), dtype=jnp.float32)
    b_fc = 0.1 * jax.random.normal(k2, (hidden,), dtype=jnp.float32)
    w_proj = 0.1 * jax.random.normal(k3, (hidden, num_embedding), dtype=jnp.float32)
    b_proj = 0.1 * jax.random.normal(k4, (num_embedding,), dtype=jnp.float32)

    y = mlp_forward(x, w_fc, b_fc, w_proj, b_proj, dropout_p=0.0)
    jax.block_until_ready(y)

    # Plain-JAX reference (exact erf GELU, like torch.nn.GELU(); dropout(p=0)=id).
    h_ref = x @ w_fc + b_fc
    h_ref = jax.nn.gelu(h_ref, approximate=False)
    ref = h_ref @ w_proj + b_proj

    assert y.shape == x.shape
    err = float(jnp.max(jnp.abs(y - ref)))
    assert jnp.allclose(y, ref, atol=2e-4, rtol=2e-4), err

    print("KERNEL_OK")
</pallas_src>

<mosaic_0001>
module attributes {stable_mosaic.version = 11 : i64} {
  func.func @_mlp_kernel(%arg0: i32, %arg1: i32, %arg2: memref<16x32xf32, #tpu.memory_space<vmem>>, %arg3: memref<32x128xf32, #tpu.memory_space<vmem>>, %arg4: memref<1x128xf32, #tpu.memory_space<vmem>>, %arg5: memref<128x32xf32, #tpu.memory_space<vmem>>, %arg6: memref<1x32xf32, #tpu.memory_space<vmem>>, %arg7: memref<16x32xf32, #tpu.memory_space<vmem>>, %arg8: memref<16x32xf32, #tpu.memory_space<vmem>>) attributes {dimension_semantics = [#tpu.dimension_semantics<parallel>, #tpu.dimension_semantics<arbitrary>], iteration_bounds = array<i64: 1, 1>, scalar_prefetch = 0 : i64, scratch_operands = 1 : i64, tpu.core_type = #tpu.core_type<tc>, window_params = [{transform_indices = @transform_0, window_bounds = array<i64: 16, 32>}, {transform_indices = @transform_1, window_bounds = array<i64: 32, 128>}, {transform_indices = @transform_2, window_bounds = array<i64: 1, 128>}, {transform_indices = @transform_3, window_bounds = array<i64: 128, 32>}, {pipeline_mode = #tpu.pipeline_mode<synchronous>, transform_indices = @transform_4, window_bounds = array<i64: 1, 32>}, {transform_indices = @transform_5, window_bounds = array<i64: 16, 32>}]} {
    %c0_i32 = arith.constant 0 : i32
    %0 = arith.cmpi eq, %arg1, %c0_i32 : i32
    %1 = arith.extui %0 : i1 to i32
    %c0_i32_0 = arith.constant 0 : i32
    %2 = arith.cmpi ne, %1, %c0_i32_0 : i32
    scf.if %2 {
      %cst_30 = arith.constant 0.000000e+00 : f32
      %57 = vector.broadcast %cst_30 : f32 to vector<16x32xf32>
      %c0_31 = arith.constant 0 : index
      %c0_32 = arith.constant 0 : index
      %58 = vector.load %arg8[%c0_31, %c0_32] : memref<16x32xf32, #tpu.memory_space<vmem>>, vector<16x32xf32>
      tpu.vector_store %arg8[%c0_31, %c0_32], %57 {strides = array<i32>} : memref<16x32xf32, #tpu.memory_space<vmem>>, vector<16x32xf32>,
    } else {
    }
    %c0 = arith.constant 0 : index
    %c0_1 = arith.constant 0 : index
    %3 = vector.load %arg2[%c0, %c0_1] : memref<16x32xf32, #tpu.memory_space<vmem>>, vector<16x32xf32>
    %c0_2 = arith.constant 0 : index
    %c0_3 = arith.constant 0 : index
    %4 = vector.load %arg3[%c0_2, %c0_3] : memref<32x128xf32, #tpu.memory_space<vmem>>, vector<32x128xf32>
    %cst = arith.constant dense<0.000000e+00> : vector<16x128xf32>
    %5 = tpu.matmul %3, %4, %cst {dimension_numbers = #tpu.dot_dimension_numbers<[1], [0], [0], [1], [0, 0, 1, 1], [], []>} : vector<16x32xf32>, vector<32x128xf32>, vector<16x128xf32> -> vector<16x128xf32>
    %c0_4 = arith.constant 0 : index
    %c0_5 = arith.constant 0 : index
    %6 = vector.load %arg4[%c0_4, %c0_5] : memref<1x128xf32, #tpu.memory_space<vmem>>, vector<1x128xf32>
    %7 = vector.broadcast %6 : vector<1x128xf32> to vector<16x128xf32>
    %8 = arith.addf %5, %7 : vector<16x128xf32>
    %cst_6 = arith.constant 0.707106769 : f32
    %9 = vector.broadcast %cst_6 : f32 to vector<16x128xf32>
    %10 = arith.mulf %8, %9 : vector<16x128xf32>
    %11 = math.absf %10 : vector<16x128xf32>
    %cst_7 = arith.constant 0.327591091 : f32
    %12 = vector.broadcast %cst_7 : f32 to vector<16x128xf32>
    %13 = arith.mulf %12, %11 : vector<16x128xf32>
    %cst_8 = arith.constant 1.000000e+00 : f32
    %14 = vector.broadcast %cst_8 : f32 to vector<16x128xf32>
    %15 = arith.addf %14, %13 : vector<16x128xf32>
    %cst_9 = arith.constant 1.000000e+00 : f32
    %16 = vector.broadcast %cst_9 : f32 to vector<16x128xf32>
    %17 = arith.divf %16, %15 : vector<16x128xf32>
    %cst_10 = arith.constant 1.06140542 : f32
    %18 = vector.broadcast %cst_10 : f32 to vector<16x128xf32>
    %19 = arith.mulf %18, %17 : vector<16x128xf32>
    %cst_11 = arith.constant 1.45315206 : f32
    %20 = vector.broadcast %cst_11 : f32 to vector<16x128xf32>
    %21 = arith.subf %19, %20 : vector<16x128xf32>
    %22 = arith.mulf %21, %17 : vector<16x128xf32>
    %cst_12 = arith.constant 1.42141378 : f32
    %23 = vector.broadcast %cst_12 : f32 to vector<16x128xf32>
    %24 = arith.addf %22, %23 : vector<16x128xf32>
    %25 = arith.mulf %24, %17 : vector<16x128xf32>
    %cst_13 = arith.constant 0.284496725 : f32
    %26 = vector.broadcast %cst_13 : f32 to vector<16x128xf32>
    %27 = arith.subf %25, %26 : vector<16x128xf32>
    %28 = arith.mulf %27, %17 : vector<16x128xf32>
    %cst_14 = arith.constant 0.254829586 : f32
    %29 = vector.broadcast %cst_14 : f32 to vector<16x128xf32>
    %30 = arith.addf %28, %29 : vector<16x128xf32>
    %31 = arith.mulf %30, %17 : vector<16x128xf32>
    %cst_15 = arith.constant 0.000000e+00 : f32
    %32 = vector.broadcast %cst_15 : f32 to vector<16x128xf32>
    %33 = arith.subf %32, %11 : vector<16x128xf32>
    %34 = arith.mulf %33, %11 : vector<16x128xf32>
    %35 = math.exp %34 : vector<16x128xf32>
    %36 = arith.mulf %31, %35 : vector<16x128xf32>
    %cst_16 = arith.constant 1.000000e+00 : f32
    %37 = vector.broadcast %cst_16 : f32 to vector<16x128xf32>
    %38 = arith.subf %37, %36 : vector<16x128xf32>
    %cst_17 = arith.constant 0.000000e+00 : f32
    %39 = vector.broadcast %cst_17 : f32 to vector<16x128xf32>
    %40 = arith.cmpf oge, %10, %39 : vector<16x128xf32>
    %cst_18 = arith.constant 0.000000e+00 : f32
    %41 = vector.broadcast %cst_18 : f32 to vector<16x128xf32>
    %42 = arith.subf %41, %38 : vector<16x128xf32>
    %43 = arith.select %40, %38, %42 : vector<16x128xi1>, vector<16x128xf32>
    %cst_19 = arith.constant 5.000000e-01 : f32
    %44 = vector.broadcast %cst_19 : f32 to vector<16x128xf32>
    %45 = arith.mulf %44, %8 : vector<16x128xf32>
    %cst_20 = arith.constant 1.000000e+00 : f32
    %46 = vector.broadcast %cst_20 : f32 to vector<16x128xf32>
    %47 = arith.addf %46, %43 : vector<16x128xf32>
    %48 = arith.mulf %45, %47 : vector<16x128xf32>
    %c0_21 = arith.constant 0 : index
    %c0_22 = arith.constant 0 : index
    %49 = vector.load %arg8[%c0_21, %c0_22] : memref<16x32xf32, #tpu.memory_space<vmem>>, vector<16x32xf32>
    %c0_23 = arith.constant 0 : index
    %c0_24 = arith.constant 0 : index
    %50 = vector.load %arg5[%c0_23, %c0_24] : memref<128x32xf32, #tpu.memory_space<vmem>>, vector<128x32xf32>
    %cst_25 = arith.constant dense<0.000000e+00> : vector<16x32xf32>
    %51 = tpu.matmul %48, %50, %cst_25 {dimension_numbers = #tpu.dot_dimension_numbers<[1], [0], [0], [1], [0, 0, 1, 1], [], []>} : vector<16x128xf32>, vector<128x32xf32>, vector<16x32xf32> -> vector<16x32xf32>
    %52 = arith.addf %49, %51 : vector<16x32xf32>
    %c0_26 = arith.constant 0 : index
    %c0_27 = arith.constant 0 : index
    %53 = vector.load %arg8[%c0_26, %c0_27] : memref<16x32xf32, #tpu.memory_space<vmem>>, vector<16x32xf32>
    tpu.vector_store %arg8[%c0_26, %c0_27], %52 {strides = array<i32>} : memref<16x32xf32, #tpu.memory_space<vmem>>, vector<16x32xf32>,
    %c0_i32_28 = arith.constant 0 : i32
    %54 = arith.cmpi eq, %arg1, %c0_i32_28 : i32
    %55 = arith.extui %54 : i1 to i32
    %c0_i32_29 = arith.constant 0 : i32
    %56 = arith.cmpi ne, %55, %c0_i32_29 : i32
    scf.if %56 {
      %c0_30 = arith.constant 0 : index
      %c0_31 = arith.constant 0 : index
      %57 = vector.load %arg8[%c0_30, %c0_31] : memref<16x32xf32, #tpu.memory_space<vmem>>, vector<16x32xf32>
      %c0_32 = arith.constant 0 : index
      %c0_33 = arith.constant 0 : index
      %58 = vector.load %arg6[%c0_32, %c0_33] : memref<1x32xf32, #tpu.memory_space<vmem>>, vector<1x32xf32>
      %59 = vector.broadcast %58 : vector<1x32xf32> to vector<16x32xf32>
      %60 = arith.addf %57, %59 : vector<16x32xf32>
      %c0_34 = arith.constant 0 : index
      %c0_35 = arith.constant 0 : index
      %61 = vector.load %arg7[%c0_34, %c0_35] : memref<16x32xf32, #tpu.memory_space<vmem>>, vector<16x32xf32>
      tpu.vector_store %arg7[%c0_34, %c0_35], %60 {strides = array<i32>} : memref<16x32xf32, #tpu.memory_space<vmem>>, vector<16x32xf32>,
    } else {
    }
    return
  }
  func.func @transform_0(%arg0: i32, %arg1: i32) -> (i32, i32) {
    %c0_i32 = arith.constant 0 : i32
    %c0_i32_0 = arith.constant 0 : i32
    return %arg0, %c0_i32 : i32, i32
  }
  func.func @transform_1(%arg0: i32, %arg1: i32) -> (i32, i32) {
    %c0_i32 = arith.constant 0 : i32
    %c0_i32_0 = arith.constant 0 : i32
    return %c0_i32, %arg1 : i32, i32
  }
  func.func @transform_2(%arg0: i32, %arg1: i32) -> (i32, i32) {
    %c0_i32 = arith.constant 0 : i32
    %c0_i32_0 = arith.constant 0 : i32
    return %c0_i32, %arg1 : i32, i32
  }
  func.func @transform_3(%arg0: i32, %arg1: i32) -> (i32, i32) {
    %c0_i32 = arith.constant 0 : i32
    %c0_i32_0 = arith.constant 0 : i32
    return %arg1, %c0_i32 : i32, i32
  }
  func.func @transform_4(%arg0: i32, %arg1: i32) -> (i32, i32) {
    %c0_i32 = arith.constant 0 : i32
    %c0_i32_0 = arith.constant 0 : i32
    %c0_i32_1 = arith.constant 0 : i32
    return %c0_i32, %c0_i32_0 : i32, i32
  }
  func.func @transform_5(%arg0: i32, %arg1: i32) -> (i32, i32) {
    %c0_i32 = arith.constant 0 : i32
    %c0_i32_0 = arith.constant 0 : i32
    return %arg0, %c0_i32 : i32, i32
  }
}

</mosaic_0001>

<llo_original>
// kernel: tpu_custom_call.1
$region0: #{tpu_custom_call.1}
  #allocation0 [shape = 'u32[]', space=smem, size = 0x4, offset = 0x4, fixed_abs, tag = 'smem constant byte address 0x4 - core index']
  #allocation1 [shape = 'u32[144,128]{1,0:T(1,128)}', space=vmem, size = 0x12000, scoped, tag = 'internal scratch']
  #allocation2 [shape = 'f32[16,32]{1,0:T(8,128)}', space=vmem, size = 0x2000, scoped, tag = 'scratch operand']
  %s0 = inlined_call_operand.vmem [shape: f32[16,32], index: 0, kind: input, shape index: {}]
  %s1 = inlined_call_operand.vmem [shape: f32[32,128], index: 1, kind: input, shape index: {}]
  %s2 = inlined_call_operand.vmem [shape: f32[1,128], index: 2, kind: input, shape index: {}]
  %s3 = inlined_call_operand.vmem [shape: f32[128,32], index: 3, kind: input, shape index: {}]
  %s4 = inlined_call_operand.vmem [shape: f32[1,32], index: 4, kind: input, shape index: {}]
  %s5 = inlined_call_operand.hbm [shape: f32[16,32], index: 5, kind: output, shape index: {}]
  %s6 = sld [smem:[#allocation0]]
  $region38: #{tpu_custom_call.1} parent=0
    _
  %s8 = ssub.s32 1, %s6
  %s9 = scalar_select 0, %s8, %s6
  $region1: #{tpu_custom_call.1} parent=0
    #allocation3 [shape = 'u8[8192]{0}', space=vmem, size = 0x2000, scoped, tag = 'output window, operand 0, single buffered']
    #allocation4 [shape = 's32[1]{0}', space=sflag, size = 0x4, scoped, tag = 'scoped memory for tpu_custom_call.1']
    %10 = vsyncpa [#allocation4], 0
    // Predicated region
    $region2: #{tpu_custom_call.1} parent=1 // pred_check
      _
    $region3: #{tpu_custom_call.1} parent=1 // pred_check_branch
      %12 = sbr.rel (0) target = $region5
    $region4: #{tpu_custom_call.1} parent=1 // pred_region
      _
    $region5: #{tpu_custom_call.1} parent=1 // pred_fallthru
      _
    // Predicated region
    $region6: #{tpu_custom_call.1} parent=1 // pred_check
      _
    $region7: #{tpu_custom_call.1} parent=1 // pred_check_branch
      %14 = sbr.rel (0) target = $region9
    $region8: #{tpu_custom_call.1} parent=1 // pred_region
      _
    $region9: #{tpu_custom_call.1} parent=1 // pred_fallthru
      _
    // Predicated region
    $region10: #{tpu_custom_call.1} parent=1 // pred_check
      _
    $region11: #{tpu_custom_call.1} parent=1 // pred_check_branch
      %16 = sbr.rel (0) target = $region13
    $region12: #{tpu_custom_call.1} parent=1 // pred_region
      _
    $region13: #{tpu_custom_call.1} parent=1 // pred_fallthru
      _
    // Predicated region
    $region14: #{tpu_custom_call.1} parent=1 // pred_check
      _
    $region15: #{tpu_custom_call.1} parent=1 // pred_check_branch
      %18 = sbr.rel (0) target = $region17
    $region16: #{tpu_custom_call.1} parent=1 // pred_region
      _
    $region17: #{tpu_custom_call.1} parent=1 // pred_fallthru
      _
    // Predicated region
    $region18: #{tpu_custom_call.1} parent=1 // pred_check
      _
    $region19: #{tpu_custom_call.1} parent=1 // pred_check_branch
      %20 = sbr.rel (0) target = $region21
    $region20: #{tpu_custom_call.1} parent=1 // pred_region
      _
    $region21: #{tpu_custom_call.1} parent=1 // pred_fallthru
      _
    %p21 = scmp.eq.s32.totalorder 0, 0
    // Predicated region
    $region22: #{tpu_custom_call.1} parent=1 // pred_check
      %p22 = pneg %p21
    $region23: #{tpu_custom_call.1} parent=1 // pred_check_branch
      %24 = sbr.rel (%p22) target = $region25
    $region24: #{tpu_custom_call.1} parent=1 // pred_region
      %vm25 = vcmask 261120
      %26 = vst.msk [vmem:[#allocation2] sm:$0xff] %vm25, 0.0
      %27 = vst.msk [vmem:[#allocation2 + $0x8] sm:$0xff] %vm25, 0.0
    $region25: #{tpu_custom_call.1} parent=1 // pred_fallthru
      _
    %v28 = vld [vmem:[%s0] sm:$0xff]
    %v29 = vld [vmem:[%s0 + $0x8] sm:$0xff]
    %v30 = vld [vmem:[%s1] sm:$0xff]
    %v31 = vld [vmem:[%s1 + $0x8] sm:$0xff]
    %v32 = vld [vmem:[%s1 + $0x10] sm:$0xff]
    %v33 = vld [vmem:[%s1 + $0x18] sm:$0xff]
    %v34 = vld [vmem:[%s2] sm:$0x1]
    %v36 = vlaneseq
    %v37 = vshrl.u32 %v36, 7
    %v38 = vsub.s32 0, %v37
    %v39 = vrot.slane %v34, %v38
    %vm41 = vcmask 261120
    %v43 = vsel %vm41, %v28, 0
    %v46 = vsel %vm41, %v29, 0
    %48 = vmatprep.subr.mxu0 0.0
    %49 = vmatpush1.msra.mxu0 0.0
    %50 = vmatprep.subr.mxu0 0.0
    %51 = vmatpush1.msra.mxu0 0.0
    %52 = vmatprep.subr.mxu0 0.0
    %53 = vmatpush1.msra.mxu0 0.0
    %54 = vmatprep.subr.mxu0 0.0
    %55 = vmatpush1.msra.mxu0 0.0
    %56 = vmatprep.subr.mxu0 0.0
    %57 = vmatpush1.msra.mxu0 0.0
    %58 = vmatprep.subr.mxu0 0.0
    %59 = vmatpush1.msra.mxu0 0.0
    %60 = vmatprep.subr.mxu0 0.0
    %61 = vmatpush1.msra.mxu0 0.0
    %62 = vmatprep.subr.mxu0 0.0
    %63 = vmatpush1.msra.mxu0 0.0
    %64 = vmatprep.subr.mxu0 0.0
    %65 = vmatpush1.msra.mxu0 0.0
    %66 = vmatprep.subr.mxu0 0.0
    %67 = vmatpush1.msra.mxu0 0.0
    %68 = vmatprep.subr.mxu0 0.0
    %69 = vmatpush1.msra.mxu0 0.0
    %70 = vmatprep.subr.mxu0 0.0
    %71 = vmatpush1.msra.mxu0 0.0
    %72 = vmatprep.subr.mxu0 0.0
    %73 = vmatpush1.msra.mxu0 %v33
    %74 = vmatprep.subr.mxu0 0.0
    %75 = vmatpush1.msra.mxu0 %v32
    %76 = vmatprep.subr.mxu0 0.0
    %77 = vmatpush1.msra.mxu0 %v31
    %78 = vmatprep.subr.mxu0 0.0
    %79 = vmatpush1.msra.mxu0 %v30
    %80 = vmatprep.subr.mxu0 0.0
    %81 = vmatpush2.msra.mxu0 0.0
    %82 = vmatprep.subr.mxu0 0.0
    %83 = vmatpush2.msra.mxu0 0.0
    %84 = vmatprep.subr.mxu0 0.0
    %85 = vmatpush2.msra.mxu0 0.0
    %86 = vmatprep.subr.mxu0 0.0
    %87 = vmatpush2.msra.mxu0 0.0
    %88 = vmatprep.subr.mxu0 0.0
    %89 = vmatpush2.msra.mxu0 0.0
    %90 = vmatprep.subr.mxu0 0.0
    %91 = vmatpush2.msra.mxu0 0.0
    %92 = vmatprep.subr.mxu0 0.0
    %93 = vmatpush2.msra.mxu0 0.0
    %94 = vmatprep.subr.mxu0 0.0
    %95 = vmatpush2.msra.mxu0 0.0
    %96 = vmatprep.subr.mxu0 0.0
    %97 = vmatpush2.msra.mxu0 0.0
    %98 = vmatprep.subr.mxu0 0.0
    %99 = vmatpush2.msra.mxu0 0.0
    %100 = vmatprep.subr.mxu0 0.0
    %101 = vmatpush2.msra.mxu0 0.0
    %102 = vmatprep.subr.mxu0 0.0
    %103 = vmatpush2.msra.mxu0 0.0
    %104 = vmatprep.subr.mxu0 0.0
    %105 = vmatpush2.msra.mxu0 0.0
    %106 = vmatprep.subr.mxu0 0.0
    %107 = vmatpush2.msra.mxu0 0.0
    %108 = vmatprep.subr.mxu0 0.0
    %109 = vmatpush2.msra.mxu0 0.0
    %110 = vmatprep.subr.mxu0 0.0
    %111 = vmatpush2.msra.mxu0 0.0
    %112 = vmatprep.mubr.f32.mxu0 0.0
    %113 = vmatmul.mubr.f32.gmra.mxu0 %v43
    %v114 = vpop.f32.mrf.mxu0
    %v115 = vadd.f32 %v39, %v114
    %v116 = vpop.f32.mrf.mxu0
    %117 = vmatprep.mubr.f32.mxu0 0.0
    %118 = vmatmul.mubr.f32.gmra.mxu0 %v46
    %v119 = vpop.f32.mrf.mxu0
    %v120 = vadd.f32 %v39, %v119
    %v121 = vpop.f32.mrf.mxu0
    %122 = vdwg.mxu0
    %v123 = vmul.f32 %v115, 0.70710677
    %v124 = vmul.f32 %v120, 0.70710677
    %v125 = vand.u32 2147483647, %v123
    %v126 = vand.u32 2147483647, %v124
    %v127 = vmul.f32 %v125, 0.3275911
    %v128 = vmul.f32 %v126, 0.3275911
    %v129 = vadd.f32 %v127, 1.0
    %v130 = vadd.f32 %v128, 1.0
    %v131 = vrcp.pop %v129
    %v132 = vmul.f32 1.0, %v131
    %v133 = vrcp.pop %v130
    %v134 = vmul.f32 1.0, %v133
    %v135 = vmul.f32 %v132, 1.0614054
    %v136 = vmul.f32 %v134, 1.0614054
    %v137 = vsub.f32 %v135, 1.4531521
    %v138 = vsub.f32 %v136, 1.4531521
    %v139 = vmul.f32 %v137, %v132
    %v140 = vmul.f32 %v138, %v134
    %v141 = vadd.f32 %v139, 1.4214138
    %v142 = vadd.f32 %v140, 1.4214138
    %v143 = vmul.f32 %v141, %v132
    %v144 = vmul.f32 %v142, %v134
    %v145 = vsub.f32 %v143, 0.28449672
    %v146 = vsub.f32 %v144, 0.28449672
    %v147 = vmul.f32 %v145, %v132
    %v148 = vmul.f32 %v146, %v134
    %v149 = vadd.f32 %v147, 0.2548296
    %v150 = vadd.f32 %v148, 0.2548296
    %v151 = vmul.f32 %v149, %v132
    %v152 = vmul.f32 %v150, %v134
    %v153 = vsub.f32 0.0, %v125
    %v154 = vsub.f32 0.0, %v126
    %v155 = vmul.f32 %v153, %v125
    %v156 = vmul.f32 %v154, %v126
    %v157 = vmul.f32 %v155, 1.442695
    %v158 = vpow.pop %v157
    %v159 = vmul.f32 %v156, 1.442695
    %v160 = vpow.pop %v159
    %v161 = vmul.f32 %v151, %v158
    %v162 = vmul.f32 %v152, %v160
    %v163 = vsub.f32 1.0, %v161
    %v164 = vsub.f32 1.0, %v162
    %vm165 = vcmp.ge.f32.partialorder %v123, 0.0
    %vm166 = vcmp.ge.f32.partialorder %v124, 0.0
    %v167 = vsub.f32 0.0, %v163
    %v168 = vsub.f32 0.0, %v164
    %v169 = vsel %vm165, %v163, %v167
    %v170 = vsel %vm166, %v164, %v168
    %v171 = vmul.f32 %v115, 0.5
    %v172 = vmul.f32 %v120, 0.5
    %v173 = vadd.f32 %v169, 1.0
    %v174 = vadd.f32 %v170, 1.0
    %v175 = vmul.f32 %v171, %v173
    %v176 = vmul.f32 %v172, %v174
    %v177 = vld [vmem:[#allocation2] sm:$0xff]
    %v178 = vld [vmem:[#allocation2 + $0x8] sm:$0xff]
    %v179 = vld [vmem:[%s3] sm:$0xff]
    %v180 = vld [vmem:[%s3 + $0x8] sm:$0xff]
    %v181 = vld [vmem:[%s3 + $0x10] sm:$0xff]
    %v182 = vld [vmem:[%s3 + $0x18] sm:$0xff]
    %v183 = vld [vmem:[%s3 + $0x20] sm:$0xff]
    %v184 = vld [vmem:[%s3 + $0x28] sm:$0xff]
    %v185 = vld [vmem:[%s3 + $0x30] sm:$0xff]
    %v186 = vld [vmem:[%s3 + $0x38] sm:$0xff]
    %v187 = vld [vmem:[%s3 + $0x40] sm:$0xff]
    %v188 = vld [vmem:[%s3 + $0x48] sm:$0xff]
    %v189 = vld [vmem:[%s3 + $0x50] sm:$0xff]
    %v190 = vld [vmem:[%s3 + $0x58] sm:$0xff]
    %v191 = vld [vmem:[%s3 + $0x60] sm:$0xff]
    %v192 = vld [vmem:[%s3 + $0x68] sm:$0xff]
    %v193 = vld [vmem:[%s3 + $0x70] sm:$0xff]
    %v194 = vld [vmem:[%s3 + $0x78] sm:$0xff]
    %195 = vmatprep.subr.mxu0 0.0
    %196 = vmatpush1.msra.mxu0 %v194
    %197 = vmatprep.subr.mxu0 0.0
    %198 = vmatpush1.msra.mxu0 %v193
    %199 = vmatprep.subr.mxu0 0.0
    %200 = vmatpush1.msra.mxu0 %v192
    %201 = vmatprep.subr.mxu0 0.0
    %202 = vmatpush1.msra.mxu0 %v191
    %203 = vmatprep.subr.mxu0 0.0
    %204 = vmatpush1.msra.mxu0 %v190
    %205 = vmatprep.subr.mxu0 0.0
    %206 = vmatpush1.msra.mxu0 %v189
    %207 = vmatprep.subr.mxu0 0.0
    %208 = vmatpush1.msra.mxu0 %v188
    %209 = vmatprep.subr.mxu0 0.0
    %210 = vmatpush1.msra.mxu0 %v187
    %211 = vmatprep.subr.mxu0 0.0
    %212 = vmatpush1.msra.mxu0 %v186
    %213 = vmatprep.subr.mxu0 0.0
    %214 = vmatpush1.msra.mxu0 %v185
    %215 = vmatprep.subr.mxu0 0.0
    %216 = vmatpush1.msra.mxu0 %v184
    %217 = vmatprep.subr.mxu0 0.0
    %218 = vmatpush1.msra.mxu0 %v183
    %219 = vmatprep.subr.mxu0 0.0
    %220 = vmatpush1.msra.mxu0 %v182
    %221 = vmatprep.subr.mxu0 0.0
    %222 = vmatpush1.msra.mxu0 %v181
    %223 = vmatprep.subr.mxu0 0.0
    %224 = vmatpush1.msra.mxu0 %v180
    %225 = vmatprep.subr.mxu0 0.0
    %226 = vmatpush1.msra.mxu0 %v179
    %227 = vmatprep.subr.mxu0 0.0
    %228 = vmatpush2.msra.mxu0 0.0
    %229 = vmatprep.subr.mxu0 0.0
    %230 = vmatpush2.msra.mxu0 0.0
    %231 = vmatprep.subr.mxu0 0.0
    %232 = vmatpush2.msra.mxu0 0.0
    %233 = vmatprep.subr.mxu0 0.0
    %234 = vmatpush2.msra.mxu0 0.0
    %235 = vmatprep.subr.mxu0 0.0
    %236 = vmatpush2.msra.mxu0 0.0
    %237 = vmatprep.subr.mxu0 0.0
    %238 = vmatpush2.msra.mxu0 0.0
    %239 = vmatprep.subr.mxu0 0.0
    %240 = vmatpush2.msra.mxu0 0.0
    %241 = vmatprep.subr.mxu0 0.0
    %242 = vmatpush2.msra.mxu0 0.0
    %243 = vmatprep.subr.mxu0 0.0
    %244 = vmatpush2.msra.mxu0 0.0
    %245 = vmatprep.subr.mxu0 0.0
    %246 = vmatpush2.msra.mxu0 0.0
    %247 = vmatprep.subr.mxu0 0.0
    %248 = vmatpush2.msra.mxu0 0.0
    %249 = vmatprep.subr.mxu0 0.0
    %250 = vmatpush2.msra.mxu0 0.0
    %251 = vmatprep.subr.mxu0 0.0
    %252 = vmatpush2.msra.mxu0 0.0
    %253 = vmatprep.subr.mxu0 0.0
    %254 = vmatpush2.msra.mxu0 0.0
    %255 = vmatprep.subr.mxu0 0.0
    %256 = vmatpush2.msra.mxu0 0.0
    %257 = vmatprep.subr.mxu0 0.0
    %258 = vmatpush2.msra.mxu0 0.0
    %259 = vmatprep.mubr.f32.mxu0 0.0
    %260 = vmatmul.mubr.f32.gmra.mxu0 %v175
    %v261 = vpop.f32.mrf.mxu0
    %v262 = vadd.f32 0.0, %v261
    %v263 = vpop.f32.mrf.mxu0
    %264 = vmatprep.mubr.f32.mxu0 0.0
    %265 = vmatmul.mubr.f32.gmra.mxu0 %v176
    %v266 = vpop.f32.mrf.mxu0
    %v267 = vadd.f32 0.0, %v266
    %v268 = vpop.f32.mrf.mxu0
    %269 = vdwg.mxu0
    %v270 = vadd.f32 %v177, %v262
    %v271 = vadd.f32 %v178, %v267
    %272 = vst.msk [vmem:[#allocation2] sm:$0xff] %vm41, %v270
    %273 = vst.msk [vmem:[#allocation2 + $0x8] sm:$0xff] %vm41, %v271
    // Predicated region
    $region26: #{tpu_custom_call.1} parent=1 // pred_check
      %p274 = pneg %p21
    $region27: #{tpu_custom_call.1} parent=1 // pred_check_branch
      %276 = sbr.rel (%p274) target = $region29
    $region28: #{tpu_custom_call.1} parent=1 // pred_region
      %v277 = vld [vmem:[#allocation2] sm:$0xff]
      %v278 = vld [vmem:[#allocation2 + $0x8] sm:$0xff]
      %v279 = vld [vmem:[%s4] sm:$0x1]
      %v281 = vlaneseq
      %v282 = vshrl.u32 %v281, 7
      %v283 = vsub.s32 0, %v282
      %v284 = vrot.slane %v279, %v283
      %v286 = vadd.f32 %v277, %v284
      %v287 = vadd.f32 %v278, %v284
      %288 = vst.msk [vmem:[#allocation3] sm:$0xff] %vm41, %v286
      %289 = vst.msk [vmem:[#allocation3 + $0x8] sm:$0xff] %vm41, %v287
    $region29: #{tpu_custom_call.1} parent=1 // pred_fallthru
      _
    // Predicated region
    $region30: #{tpu_custom_call.1} parent=1 // pred_check
      _
    $region31: #{tpu_custom_call.1} parent=1 // pred_check_branch
      %291 = sbr.rel (0) target = $region33
    $region32: #{tpu_custom_call.1} parent=1 // pred_region
      %s293 = ssub.s32 256, 256
      %294 = vsyncadd [#allocation4], %s293
      %s295 = sshll.u32 [#allocation3], 4
      %s296 = int_to_ptr.vmem [resolvable:$true] %s295
      %301 = dma.vmem_to_hbm [thread:$0]  %s296, 256, %s5, [#allocation4], 128, 128, 8
    $region33: #{tpu_custom_call.1} parent=1 // pred_fallthru
      _
    // Predicated region
    $region34: #{tpu_custom_call.1} parent=1 // pred_check
      _
    $region35: #{tpu_custom_call.1} parent=1 // pred_check_branch
      %303 = sbr.rel (0) target = $region37
    $region36: #{tpu_custom_call.1} parent=1 // pred_region
      %304 = dma.done [#allocation4], 256
    $region37: #{tpu_custom_call.1} parent=1 // pred_fallthru
      _
    %305 = vsyncpa [#allocation4], 1

</llo_original>
